<compile_context>
chip_gen: v6e
topology: v6e:2x2x1
jax: 0.10.0
libtpu: 0.0.40
codegen_flags: <defaults>
</compile_context>

<pallas_src>
import jax
import jax.numpy as jnp
from jax.experimental import pallas as pl
from jax.experimental.pallas import tpu as pltpu

# Logical layer dims of the PyTorch module: linear1..linear5.
LOGICAL_DIMS = [(50, 160), (160, 160), (160, 160), (160, 160), (160, 121)]
LANE = 128
SUBLANE = 8
K1_PAD = 64          # layer-1 contraction dim 50 -> 64 (bf16 sublane tile = 16)


def _round_up(n, m):
    return ((n + m - 1) // m) * m


def _fused_mlp_kernel(x_ref,
                      w1, b1, w2, b2, w3, b3, w4, b4, w5, b5,
                      o_ref):
    """Whole 5-layer chain in one kernel body; weights resident in VMEM,
    intermediate activations live as values (vregs), never stored."""
    h = x_ref[...]                       # (TILE_M, 64) f32

    def layer(h, w_ref, b_ref, act):
        # bf16 x bf16 MXU matmul, f32 accumulation.
        y = jnp.dot(h.astype(w_ref.dtype), w_ref[...],
                    preferred_element_type=jnp.float32)
        y = y + b_ref[...]               # (1, out) f32 bias broadcasts over rows
        if act == "relu":
            return jnp.maximum(y, 0.0)   # VPU, f32
        return jax.nn.sigmoid(y)         # EUP, f32

    h = layer(h, w1, b1, "relu")
    h = layer(h, w2, b2, "relu")
    h = layer(h, w3, b3, "relu")
    h = layer(h, w4, b4, "relu")
    h = layer(h, w5, b5, "sigmoid")
    o_ref[...] = h.astype(o_ref.dtype)   # (TILE_M, 128): lane-dense, unmasked store


def fused_mlp(x_pad, packed_params, *, tile_m):
    """x_pad: (B_pad, 64) f32 with B_pad % tile_m == 0.
    packed_params: list of (w bf16 (in,out), b f32 (1,out))."""
    B, in_pad = x_pad.shape
    assert B % tile_m == 0
    n_tiles = B // tile_m

    flat_args = []
    in_specs = [pl.BlockSpec((tile_m, in_pad), lambda i: (i, 0))]
    for (w, b) in packed_params:
        flat_args += [w, b]
        # Full-array blocks, constant index_map -> fetched once, VMEM-resident
        # across all batch-grid steps.
        in_specs += [pl.BlockSpec(w.shape, lambda i: (0, 0)),
                     pl.BlockSpec(b.shape, lambda i: (0, 0))]
    out_pad = packed_params[-1][0].shape[1]

    # True (unpadded-ish) cost for the XLA scheduler.
    flops = 2 * B * sum(int(w.shape[0]) * int(w.shape[1]) for (w, _) in packed_params)
    bytes_accessed = (x_pad.size * x_pad.dtype.itemsize
                      + sum(w.size * w.dtype.itemsize + b.size * b.dtype.itemsize
                            for (w, b) in packed_params)
                      + B * out_pad * 4)
    cost = pl.CostEstimate(flops=flops,
                           transcendentals=B * out_pad,     # final sigmoid
                           bytes_accessed=bytes_accessed)

    # Shard the batch grid across cores only when there is enough work;
    # at 1-3 tiles keep it on one TensorCore (duplicating weight DMA on v7x
    # would be pure overhead).
    semantics = ("parallel",) if n_tiles >= 4 else ("arbitrary",)

    return pl.pallas_call(
        _fused_mlp_kernel,
        out_shape=jax.ShapeDtypeStruct((B, out_pad), jnp.float32),
        grid=(n_tiles,),
        in_specs=in_specs,
        out_specs=pl.BlockSpec((tile_m, out_pad), lambda i: (i, 0)),
        cost_estimate=cost,
        compiler_params=pltpu.CompilerParams(dimension_semantics=semantics),
    )(x_pad, *flat_args)


def init_linear_params(key, in_c, out_c):
    """torch.nn.Linear-style init (uniform +/- 1/sqrt(in_c)), logical shapes, f32."""
    kw, kb = jax.random.split(key)
    bound = 1.0 / jnp.sqrt(jnp.float32(in_c))
    w = jax.random.uniform(kw, (in_c, out_c), jnp.float32, -bound, bound)
    b = jax.random.uniform(kb, (out_c,), jnp.float32, -bound, bound)
    return w, b


def make_linear_model_params(key):
    keys = jax.random.split(key, len(LOGICAL_DIMS))
    return [init_linear_params(k, i, o) for k, (i, o) in zip(keys, LOGICAL_DIMS)]


def pack_params(params):
    """Layer 1: pad contraction dim 50->64. Hidden dims stay at 160 (no padding —
    intermediates are vreg values, masked lane tiles there cost nothing).
    Final layer: pad out dim 121->128 so the o_ref store is lane-dense.
    Weights -> bf16 for the MXU; biases stay f32 as (1, out) rows."""
    n = len(params)
    packed = []
    for idx, (w, b) in enumerate(params):
        in_c, out_c = w.shape
        in_pad = K1_PAD if idx == 0 else in_c
        out_pad = _round_up(out_c, LANE) if idx == n - 1 else out_c
        w_p = jnp.zeros((in_pad, out_pad), jnp.float32).at[:in_c, :out_c].set(w)
        b_p = jnp.zeros((1, out_pad), jnp.float32).at[0, :out_c].set(b)
        packed.append((w_p.astype(jnp.bfloat16), b_p))
    return packed


@jax.jit
def linear_model_forward(packed_params, x):
    B, in_c = x.shape
    in_pad = packed_params[0][0].shape[0]        # 64
    # TILE_M: full MXU-height tiles for big batches (256 on v6e/v7x; still fine on
    # v5e as 2 passes), otherwise just round the batch to the sublane.
    tile_m = 256 if B >= 256 else _round_up(B, SUBLANE)
    b_pad = _round_up(B, tile_m)
    x_p = jnp.zeros((b_pad, in_pad), x.dtype).at[:B, :in_c].set(x)
    out_pad = fused_mlp(x_p, packed_params, tile_m=tile_m)
    return out_pad[:B, :LOGICAL_DIMS[-1][1]]     # strip row + lane padding (128 -> 121)


def reference_forward_matched(params, x):
    """Pure-JAX reference with the SAME compute precision as the kernel
    (bf16 MXU operands, f32 accumulation, f32 epilogue)."""
    h = x
    n = len(params)
    for i, (w, b) in enumerate(params):
        y = jnp.dot(h.astype(jnp.bfloat16), w.astype(jnp.bfloat16),
                    preferred_element_type=jnp.float32) + b
        h = jax.nn.sigmoid(y) if i == n - 1 else jnp.maximum(y, 0.0)
    return h


def reference_forward_f32(params, x):
    """Pure-f32 reference matching the original PyTorch module's semantics."""
    h = x
    n = len(params)
    for i, (w, b) in enumerate(params):
        y = h @ w + b
        h = jax.nn.sigmoid(y) if i == n - 1 else jnp.maximum(y, 0.0)
    return h


if __name__ == "__main__":
    key = jax.random.PRNGKey(0)
    k_params, k_x = jax.random.split(key)
    params = make_linear_model_params(k_params)
    packed = pack_params(params)

    batch = 8
    x = jax.random.normal(k_x, (batch, 50), jnp.float32)

    out = linear_model_forward(packed, x)
    out = jax.block_until_ready(out)
    assert out.shape == (batch, 121), out.shape

    ref_matched = reference_forward_matched(params, x)
    ref_f32 = reference_forward_f32(params, x)

    err_matched = float(jnp.max(jnp.abs(out - ref_matched)))
    err_f32 = float(jnp.max(jnp.abs(out - ref_f32)))
    assert jnp.allclose(out, ref_matched, atol=1e-3, rtol=1e-3), (
        "mismatch vs precision-matched reference: %e" % err_matched)
    # bf16 MXU operands vs pure-f32 torch semantics: loose sanity bound only.
    assert err_f32 < 5e-2, "drift vs f32 reference too large: %e" % err_f32

    print("KERNEL_OK")
</pallas_src>

<mosaic_0001>
module attributes {stable_mosaic.version = 11 : i64} {
  func.func @_fused_mlp_kernel(%arg0: i32, %arg1: memref<8x64xf32, #tpu.memory_space<vmem>>, %arg2: memref<64x160xbf16, #tpu.memory_space<vmem>>, %arg3: memref<1x160xf32, #tpu.memory_space<vmem>>, %arg4: memref<160x160xbf16, #tpu.memory_space<vmem>>, %arg5: memref<1x160xf32, #tpu.memory_space<vmem>>, %arg6: memref<160x160xbf16, #tpu.memory_space<vmem>>, %arg7: memref<1x160xf32, #tpu.memory_space<vmem>>, %arg8: memref<160x160xbf16, #tpu.memory_space<vmem>>, %arg9: memref<1x160xf32, #tpu.memory_space<vmem>>, %arg10: memref<160x128xbf16, #tpu.memory_space<vmem>>, %arg11: memref<1x128xf32, #tpu.memory_space<vmem>>, %arg12: memref<8x128xf32, #tpu.memory_space<vmem>>) attributes {dimension_semantics = [#tpu.dimension_semantics<arbitrary>], iteration_bounds = array<i64: 1>, scalar_prefetch = 0 : i64, scratch_operands = 0 : i64, tpu.core_type = #tpu.core_type<tc>, window_params = [{transform_indices = @transform_0, window_bounds = array<i64: 8, 64>}, {pipeline_mode = #tpu.pipeline_mode<synchronous>, transform_indices = @transform_1, window_bounds = array<i64: 64, 160>}, {pipeline_mode = #tpu.pipeline_mode<synchronous>, transform_indices = @transform_2, window_bounds = array<i64: 1, 160>}, {pipeline_mode = #tpu.pipeline_mode<synchronous>, transform_indices = @transform_3, window_bounds = array<i64: 160, 160>}, {pipeline_mode = #tpu.pipeline_mode<synchronous>, transform_indices = @transform_4, window_bounds = array<i64: 1, 160>}, {pipeline_mode = #tpu.pipeline_mode<synchronous>, transform_indices = @transform_5, window_bounds = array<i64: 160, 160>}, {pipeline_mode = #tpu.pipeline_mode<synchronous>, transform_indices = @transform_6, window_bounds = array<i64: 1, 160>}, {pipeline_mode = #tpu.pipeline_mode<synchronous>, transform_indices = @transform_7, window_bounds = array<i64: 160, 160>}, {pipeline_mode = #tpu.pipeline_mode<synchronous>, transform_indices = @transform_8, window_bounds = array<i64: 1, 160>}, {pipeline_mode = #tpu.pipeline_mode<synchronous>, transform_indices = @transform_9, window_bounds = array<i64: 160, 128>}, {pipeline_mode = #tpu.pipeline_mode<synchronous>, transform_indices = @transform_10, window_bounds = array<i64: 1, 128>}, {transform_indices = @transform_11, window_bounds = array<i64: 8, 128>}]} {
    %c0 = arith.constant 0 : index
    %c0_0 = arith.constant 0 : index
    %0 = vector.load %arg1[%c0, %c0_0] : memref<8x64xf32, #tpu.memory_space<vmem>>, vector<8x64xf32>
    %1 = arith.truncf %0 : vector<8x64xf32> to vector<8x64xbf16>
    %c0_1 = arith.constant 0 : index
    %c0_2 = arith.constant 0 : index
    %2 = vector.load %arg2[%c0_1, %c0_2] : memref<64x160xbf16, #tpu.memory_space<vmem>>, vector<64x160xbf16>
    %cst = arith.constant dense<0.000000e+00> : vector<8x160xf32>
    %3 = tpu.matmul %1, %2, %cst {dimension_numbers = #tpu.dot_dimension_numbers<[1], [0], [0], [1], [0, 0, 1, 1], [], []>} : vector<8x64xbf16>, vector<64x160xbf16>, vector<8x160xf32> -> vector<8x160xf32>
    %c0_3 = arith.constant 0 : index
    %c0_4 = arith.constant 0 : index
    %4 = vector.load %arg3[%c0_3, %c0_4] : memref<1x160xf32, #tpu.memory_space<vmem>>, vector<1x160xf32>
    %5 = vector.broadcast %4 : vector<1x160xf32> to vector<8x160xf32>
    %6 = arith.addf %3, %5 : vector<8x160xf32>
    %cst_5 = arith.constant 0.000000e+00 : f32
    %7 = vector.broadcast %cst_5 : f32 to vector<8x160xf32>
    %8 = arith.maximumf %6, %7 : vector<8x160xf32>
    %9 = arith.truncf %8 : vector<8x160xf32> to vector<8x160xbf16>
    %c0_6 = arith.constant 0 : index
    %c0_7 = arith.constant 0 : index
    %10 = vector.load %arg4[%c0_6, %c0_7] : memref<160x160xbf16, #tpu.memory_space<vmem>>, vector<160x160xbf16>
    %cst_8 = arith.constant dense<0.000000e+00> : vector<8x160xf32>
    %11 = tpu.matmul %9, %10, %cst_8 {dimension_numbers = #tpu.dot_dimension_numbers<[1], [0], [0], [1], [0, 0, 1, 1], [], []>} : vector<8x160xbf16>, vector<160x160xbf16>, vector<8x160xf32> -> vector<8x160xf32>
    %c0_9 = arith.constant 0 : index
    %c0_10 = arith.constant 0 : index
    %12 = vector.load %arg5[%c0_9, %c0_10] : memref<1x160xf32, #tpu.memory_space<vmem>>, vector<1x160xf32>
    %13 = vector.broadcast %12 : vector<1x160xf32> to vector<8x160xf32>
    %14 = arith.addf %11, %13 : vector<8x160xf32>
    %cst_11 = arith.constant 0.000000e+00 : f32
    %15 = vector.broadcast %cst_11 : f32 to vector<8x160xf32>
    %16 = arith.maximumf %14, %15 : vector<8x160xf32>
    %17 = arith.truncf %16 : vector<8x160xf32> to vector<8x160xbf16>
    %c0_12 = arith.constant 0 : index
    %c0_13 = arith.constant 0 : index
    %18 = vector.load %arg6[%c0_12, %c0_13] : memref<160x160xbf16, #tpu.memory_space<vmem>>, vector<160x160xbf16>
    %cst_14 = arith.constant dense<0.000000e+00> : vector<8x160xf32>
    %19 = tpu.matmul %17, %18, %cst_14 {dimension_numbers = #tpu.dot_dimension_numbers<[1], [0], [0], [1], [0, 0, 1, 1], [], []>} : vector<8x160xbf16>, vector<160x160xbf16>, vector<8x160xf32> -> vector<8x160xf32>
    %c0_15 = arith.constant 0 : index
    %c0_16 = arith.constant 0 : index
    %20 = vector.load %arg7[%c0_15, %c0_16] : memref<1x160xf32, #tpu.memory_space<vmem>>, vector<1x160xf32>
    %21 = vector.broadcast %20 : vector<1x160xf32> to vector<8x160xf32>
    %22 = arith.addf %19, %21 : vector<8x160xf32>
    %cst_17 = arith.constant 0.000000e+00 : f32
    %23 = vector.broadcast %cst_17 : f32 to vector<8x160xf32>
    %24 = arith.maximumf %22, %23 : vector<8x160xf32>
    %25 = arith.truncf %24 : vector<8x160xf32> to vector<8x160xbf16>
    %c0_18 = arith.constant 0 : index
    %c0_19 = arith.constant 0 : index
    %26 = vector.load %arg8[%c0_18, %c0_19] : memref<160x160xbf16, #tpu.memory_space<vmem>>, vector<160x160xbf16>
    %cst_20 = arith.constant dense<0.000000e+00> : vector<8x160xf32>
    %27 = tpu.matmul %25, %26, %cst_20 {dimension_numbers = #tpu.dot_dimension_numbers<[1], [0], [0], [1], [0, 0, 1, 1], [], []>} : vector<8x160xbf16>, vector<160x160xbf16>, vector<8x160xf32> -> vector<8x160xf32>
    %c0_21 = arith.constant 0 : index
    %c0_22 = arith.constant 0 : index
    %28 = vector.load %arg9[%c0_21, %c0_22] : memref<1x160xf32, #tpu.memory_space<vmem>>, vector<1x160xf32>
    %29 = vector.broadcast %28 : vector<1x160xf32> to vector<8x160xf32>
    %30 = arith.addf %27, %29 : vector<8x160xf32>
    %cst_23 = arith.constant 0.000000e+00 : f32
    %31 = vector.broadcast %cst_23 : f32 to vector<8x160xf32>
    %32 = arith.maximumf %30, %31 : vector<8x160xf32>
    %33 = arith.truncf %32 : vector<8x160xf32> to vector<8x160xbf16>
    %c0_24 = arith.constant 0 : index
    %c0_25 = arith.constant 0 : index
    %34 = vector.load %arg10[%c0_24, %c0_25] : memref<160x128xbf16, #tpu.memory_space<vmem>>, vector<160x128xbf16>
    %cst_26 = arith.constant dense<0.000000e+00> : vector<8x128xf32>
    %35 = tpu.matmul %33, %34, %cst_26 {dimension_numbers = #tpu.dot_dimension_numbers<[1], [0], [0], [1], [0, 0, 1, 1], [], []>} : vector<8x160xbf16>, vector<160x128xbf16>, vector<8x128xf32> -> vector<8x128xf32>
    %c0_27 = arith.constant 0 : index
    %c0_28 = arith.constant 0 : index
    %36 = vector.load %arg11[%c0_27, %c0_28] : memref<1x128xf32, #tpu.memory_space<vmem>>, vector<1x128xf32>
    %37 = vector.broadcast %36 : vector<1x128xf32> to vector<8x128xf32>
    %38 = arith.addf %35, %37 : vector<8x128xf32>
    %39 = arith.negf %38 : vector<8x128xf32>
    %40 = math.exp %39 : vector<8x128xf32>
    %cst_29 = arith.constant 1.000000e+00 : f32
    %41 = vector.broadcast %cst_29 : f32 to vector<8x128xf32>
    %42 = arith.addf %41, %40 : vector<8x128xf32>
    %43 = arith.divf %41, %42 : vector<8x128xf32>
    %c0_30 = arith.constant 0 : index
    %c0_31 = arith.constant 0 : index
    %44 = vector.load %arg12[%c0_30, %c0_31] : memref<8x128xf32, #tpu.memory_space<vmem>>, vector<8x128xf32>
    tpu.vector_store %arg12[%c0_30, %c0_31], %43 {strides = array<i32>} : memref<8x128xf32, #tpu.memory_space<vmem>>, vector<8x128xf32>,
    return
  }
  func.func @transform_0(%arg0: i32) -> (i32, i32) {
    %c0_i32 = arith.constant 0 : i32
    %c0_i32_0 = arith.constant 0 : i32
    return %arg0, %c0_i32 : i32, i32
  }
  func.func @transform_1(%arg0: i32) -> (i32, i32) {
    %c0_i32 = arith.constant 0 : i32
    %c0_i32_0 = arith.constant 0 : i32
    %c0_i32_1 = arith.constant 0 : i32
    return %c0_i32, %c0_i32_0 : i32, i32
  }
  func.func @transform_2(%arg0: i32) -> (i32, i32) {
    %c0_i32 = arith.constant 0 : i32
    %c0_i32_0 = arith.constant 0 : i32
    %c0_i32_1 = arith.constant 0 : i32
    return %c0_i32, %c0_i32_0 : i32, i32
  }
  func.func @transform_3(%arg0: i32) -> (i32, i32) {
    %c0_i32 = arith.constant 0 : i32
    %c0_i32_0 = arith.constant 0 : i32
    %c0_i32_1 = arith.constant 0 : i32
    return %c0_i32, %c0_i32_0 : i32, i32
  }
  func.func @transform_4(%arg0: i32) -> (i32, i32) {
    %c0_i32 = arith.constant 0 : i32
    %c0_i32_0 = arith.constant 0 : i32
    %c0_i32_1 = arith.constant 0 : i32
    return %c0_i32, %c0_i32_0 : i32, i32
  }
  func.func @transform_5(%arg0: i32) -> (i32, i32) {
    %c0_i32 = arith.constant 0 : i32
    %c0_i32_0 = arith.constant 0 : i32
    %c0_i32_1 = arith.constant 0 : i32
    return %c0_i32, %c0_i32_0 : i32, i32
  }
  func.func @transform_6(%arg0: i32) -> (i32, i32) {
    %c0_i32 = arith.constant 0 : i32
    %c0_i32_0 = arith.constant 0 : i32
    %c0_i32_1 = arith.constant 0 : i32
    return %c0_i32, %c0_i32_0 : i32, i32
  }
  func.func @transform_7(%arg0: i32) -> (i32, i32) {
    %c0_i32 = arith.constant 0 : i32
    %c0_i32_0 = arith.constant 0 : i32
    %c0_i32_1 = arith.constant 0 : i32
    return %c0_i32, %c0_i32_0 : i32, i32
  }
  func.func @transform_8(%arg0: i32) -> (i32, i32) {
    %c0_i32 = arith.constant 0 : i32
    %c0_i32_0 = arith.constant 0 : i32
    %c0_i32_1 = arith.constant 0 : i32
    return %c0_i32, %c0_i32_0 : i32, i32
  }
  func.func @transform_9(%arg0: i32) -> (i32, i32) {
    %c0_i32 = arith.constant 0 : i32
    %c0_i32_0 = arith.constant 0 : i32
    %c0_i32_1 = arith.constant 0 : i32
    return %c0_i32, %c0_i32_0 : i32, i32
  }
  func.func @transform_10(%arg0: i32) -> (i32, i32) {
    %c0_i32 = arith.constant 0 : i32
    %c0_i32_0 = arith.constant 0 : i32
    %c0_i32_1 = arith.constant 0 : i32
    return %c0_i32, %c0_i32_0 : i32, i32
  }
  func.func @transform_11(%arg0: i32) -> (i32, i32) {
    %c0_i32 = arith.constant 0 : i32
    %c0_i32_0 = arith.constant 0 : i32
    return %arg0, %c0_i32 : i32, i32
  }
}

</mosaic_0001>

<llo_original>
// kernel: linear_model_forward.1
$region0: #{linear_model_forward.1}
  #allocation0 [shape = 'u32[]', space=smem, size = 0x4, offset = 0x4, fixed_abs, tag = 'smem constant byte address 0x4 - core index']
  #allocation1 [shape = 'u32[144,128]{1,0:T(1,128)}', space=vmem, size = 0x12000, scoped, tag = 'internal scratch']
  %s0 = inlined_call_operand.vmem [shape: f32[8,64], index: 0, kind: input, shape index: {}]
  %s1 = inlined_call_operand.hbm [shape: bf16[64,160], index: 1, kind: input, shape index: {}]
  %s2 = inlined_call_operand.vmem [shape: f32[1,160], index: 2, kind: input, shape index: {}]
  %s3 = inlined_call_operand.hbm [shape: bf16[160,160], index: 3, kind: input, shape index: {}]
  %s4 = inlined_call_operand.vmem [shape: f32[1,160], index: 4, kind: input, shape index: {}]
  %s5 = inlined_call_operand.hbm [shape: bf16[160,160], index: 5, kind: input, shape index: {}]
  %s6 = inlined_call_operand.vmem [shape: f32[1,160], index: 6, kind: input, shape index: {}]
  %s7 = inlined_call_operand.hbm [shape: bf16[160,160], index: 7, kind: input, shape index: {}]
  %s8 = inlined_call_operand.vmem [shape: f32[1,160], index: 8, kind: input, shape index: {}]
  %s9 = inlined_call_operand.hbm [shape: bf16[160,128], index: 9, kind: input, shape index: {}]
  %s10 = inlined_call_operand.vmem [shape: f32[1,128], index: 10, kind: input, shape index: {}]
  %s11 = inlined_call_operand.hbm [shape: f32[8,128], index: 11, kind: output, shape index: {}]
  %s12 = sld [smem:[#allocation0]]
  $region74: #{linear_model_forward.1} parent=0
    _
  %s14 = ssub.s32 1, %s12
  %s15 = scalar_select 0, %s14, %s12
  $region1: #{linear_model_forward.1} parent=0
    #allocation2 [shape = 'u8[32768]{0}', space=vmem, size = 0x8000, scoped, tag = 'input window, operand 1, single buffered']
    #allocation3 [shape = 's32[1]{0}', space=sflag, size = 0x4, scoped, tag = 'scoped memory for linear_model_forward.1']
    #allocation4 [shape = 's32[1]{0}', space=sflag, size = 0x4, scoped, tag = 'scoped memory for linear_model_forward.1']
    #allocation5 [shape = 'u8[81920]{0}', space=vmem, size = 0x14000, scoped, tag = 'input window, operand 3, single buffered']
    #allocation6 [shape = 's32[1]{0}', space=sflag, size = 0x4, scoped, tag = 'scoped memory for linear_model_forward.1']
    #allocation7 [shape = 'u8[81920]{0}', space=vmem, size = 0x14000, scoped, tag = 'input window, operand 5, single buffered']
    #allocation8 [shape = 'u8[81920]{0}', space=vmem, size = 0x14000, scoped, tag = 'input window, operand 7, single buffered']
    #allocation9 [shape = 's32[1]{0}', space=sflag, size = 0x4, scoped, tag = 'scoped memory for linear_model_forward.1']
    #allocation10 [shape = 'u8[40960]{0}', space=vmem, size = 0xa000, scoped, tag = 'input window, operand 9, single buffered']
    #allocation11 [shape = 'u8[4096]{0}', space=vmem, size = 0x1000, scoped, tag = 'output window, operand 0, single buffered']
    %16 = vsyncpa [#allocation3], 0
    %17 = vsyncpa [#allocation6], 0
    %18 = vsyncpa [#allocation9], 0
    %19 = vsyncpa [#allocation4], 0
    // Predicated region
    $region2: #{linear_model_forward.1} parent=1 // pred_check
      _
    $region3: #{linear_model_forward.1} parent=1 // pred_check_branch
      %21 = sbr.rel (0) target = $region5
    $region4: #{linear_model_forward.1} parent=1 // pred_region
      _
    $region5: #{linear_model_forward.1} parent=1 // pred_fallthru
      _
    // Predicated region
    $region6: #{linear_model_forward.1} parent=1 // pred_check
      _
    $region7: #{linear_model_forward.1} parent=1 // pred_check_branch
      %23 = sbr.rel (0) target = $region9
    $region8: #{linear_model_forward.1} parent=1 // pred_region
      %s25 = ssub.s32 1024, 1024
      %26 = vsyncadd [#allocation3], %s25
      %s27 = sshll.u32 [#allocation2], 4
      %s28 = int_to_ptr.vmem [resolvable:$true] %s27
      %33 = dma.hbm_to_vmem [thread:$0]  %s1, 1024, %s28, [#allocation3], 128, 128, 8
    $region9: #{linear_model_forward.1} parent=1 // pred_fallthru
      _
    // Predicated region
    $region10: #{linear_model_forward.1} parent=1 // pred_check
      _
    $region11: #{linear_model_forward.1} parent=1 // pred_check_branch
      %35 = sbr.rel (0) target = $region13
    $region12: #{linear_model_forward.1} parent=1 // pred_region
      _
    $region13: #{linear_model_forward.1} parent=1 // pred_fallthru
      _
    // Predicated region
    $region14: #{linear_model_forward.1} parent=1 // pred_check
      _
    $region15: #{linear_model_forward.1} parent=1 // pred_check_branch
      %37 = sbr.rel (0) target = $region17
    $region16: #{linear_model_forward.1} parent=1 // pred_region
      %s39 = ssub.s32 2560, 2560
      %40 = vsyncadd [#allocation6], %s39
      %s41 = sshll.u32 [#allocation5], 4
      %s42 = int_to_ptr.vmem [resolvable:$true] %s41
      %47 = dma.hbm_to_vmem [thread:$0]  %s3, 2560, %s42, [#allocation6], 128, 128, 8
    $region17: #{linear_model_forward.1} parent=1 // pred_fallthru
      _
    // Predicated region
    $region18: #{linear_model_forward.1} parent=1 // pred_check
      _
    $region19: #{linear_model_forward.1} parent=1 // pred_check_branch
      %49 = sbr.rel (0) target = $region21
    $region20: #{linear_model_forward.1} parent=1 // pred_region
      _
    $region21: #{linear_model_forward.1} parent=1 // pred_fallthru
      _
    // Predicated region
    $region22: #{linear_model_forward.1} parent=1 // pred_check
      _
    $region23: #{linear_model_forward.1} parent=1 // pred_check_branch
      %51 = sbr.rel (0) target = $region25
    $region24: #{linear_model_forward.1} parent=1 // pred_region
      %s53 = ssub.s32 2560, 2560
      %54 = vsyncadd [#allocation6], %s53
      %s55 = sshll.u32 [#allocation7], 4
      %s56 = int_to_ptr.vmem [resolvable:$true] %s55
      %61 = dma.hbm_to_vmem [thread:$0]  %s5, 2560, %s56, [#allocation6], 128, 128, 8
    $region25: #{linear_model_forward.1} parent=1 // pred_fallthru
      _
    // Predicated region
    $region26: #{linear_model_forward.1} parent=1 // pred_check
      _
    $region27: #{linear_model_forward.1} parent=1 // pred_check_branch
      %63 = sbr.rel (0) target = $region29
    $region28: #{linear_model_forward.1} parent=1 // pred_region
      _
    $region29: #{linear_model_forward.1} parent=1 // pred_fallthru
      _
    // Predicated region
    $region30: #{linear_model_forward.1} parent=1 // pred_check
      _
    $region31: #{linear_model_forward.1} parent=1 // pred_check_branch
      %65 = sbr.rel (0) target = $region33
    $region32: #{linear_model_forward.1} parent=1 // pred_region
      %s67 = ssub.s32 2560, 2560
      %68 = vsyncadd [#allocation9], %s67
      %s69 = sshll.u32 [#allocation8], 4
      %s70 = int_to_ptr.vmem [resolvable:$true] %s69
      %75 = dma.hbm_to_vmem [thread:$0]  %s7, 2560, %s70, [#allocation9], 128, 128, 8
    $region33: #{linear_model_forward.1} parent=1 // pred_fallthru
      _
    // Predicated region
    $region34: #{linear_model_forward.1} parent=1 // pred_check
      _
    $region35: #{linear_model_forward.1} parent=1 // pred_check_branch
      %77 = sbr.rel (0) target = $region37
    $region36: #{linear_model_forward.1} parent=1 // pred_region
      _
    $region37: #{linear_model_forward.1} parent=1 // pred_fallthru
      _
    // Predicated region
    $region38: #{linear_model_forward.1} parent=1 // pred_check
      _
    $region39: #{linear_model_forward.1} parent=1 // pred_check_branch
      %79 = sbr.rel (0) target = $region41
    $region40: #{linear_model_forward.1} parent=1 // pred_region
      %s81 = ssub.s32 1280, 1280
      %82 = vsyncadd [#allocation9], %s81
      %s83 = sshll.u32 [#allocation10], 4
      %s84 = int_to_ptr.vmem [resolvable:$true] %s83
      %89 = dma.hbm_to_vmem [thread:$0]  %s9, 1280, %s84, [#allocation9], 64, 64, 4
    $region41: #{linear_model_forward.1} parent=1 // pred_fallthru
      _
    // Predicated region
    $region42: #{linear_model_forward.1} parent=1 // pred_check
      _
    $region43: #{linear_model_forward.1} parent=1 // pred_check_branch
      %91 = sbr.rel (0) target = $region45
    $region44: #{linear_model_forward.1} parent=1 // pred_region
      _
    $region45: #{linear_model_forward.1} parent=1 // pred_fallthru
      _
    // Predicated region
    $region46: #{linear_model_forward.1} parent=1 // pred_check
      _
    $region47: #{linear_model_forward.1} parent=1 // pred_check_branch
      %93 = sbr.rel (0) target = $region49
    $region48: #{linear_model_forward.1} parent=1 // pred_region
      %94 = dma.done [#allocation3], 1024
    $region49: #{linear_model_forward.1} parent=1 // pred_fallthru
      _
    // Predicated region
    $region50: #{linear_model_forward.1} parent=1 // pred_check
      _
    $region51: #{linear_model_forward.1} parent=1 // pred_check_branch
      %96 = sbr.rel (0) target = $region53
    $region52: #{linear_model_forward.1} parent=1 // pred_region
      %97 = dma.done [#allocation6], 2560
    $region53: #{linear_model_forward.1} parent=1 // pred_fallthru
      _
    // Predicated region
    $region54: #{linear_model_forward.1} parent=1 // pred_check
      _
    $region55: #{linear_model_forward.1} parent=1 // pred_check_branch
      %99 = sbr.rel (0) target = $region57
    $region56: #{linear_model_forward.1} parent=1 // pred_region
      %100 = dma.done [#allocation6], 2560
    $region57: #{linear_model_forward.1} parent=1 // pred_fallthru
      _
    // Predicated region
    $region58: #{linear_model_forward.1} parent=1 // pred_check
      _
    $region59: #{linear_model_forward.1} parent=1 // pred_check_branch
      %102 = sbr.rel (0) target = $region61
    $region60: #{linear_model_forward.1} parent=1 // pred_region
      %103 = dma.done [#allocation9], 2560
    $region61: #{linear_model_forward.1} parent=1 // pred_fallthru
      _
    // Predicated region
    $region62: #{linear_model_forward.1} parent=1 // pred_check
      _
    $region63: #{linear_model_forward.1} parent=1 // pred_check_branch
      %105 = sbr.rel (0) target = $region65
    $region64: #{linear_model_forward.1} parent=1 // pred_region
      %106 = dma.done [#allocation9], 1280
    $region65: #{linear_model_forward.1} parent=1 // pred_fallthru
      _
    %v108 = vld [vmem:[%s0] sm:$0xff]
    %v109 = vpack.c.bf16 %v108, %v108
    %v110 = vld [vmem:[#allocation2] sm:$0xff]
    %v111 = vld [vmem:[#allocation2 + $0x8] sm:$0xff]
    %v112 = vld [vmem:[#allocation2 + $0x10] sm:$0xff]
    %v113 = vld [vmem:[#allocation2 + $0x18] sm:$0xff]
    %v114 = vld [vmem:[#allocation2 + $0x20] sm:$0xff]
    %v115 = vld [vmem:[#allocation2 + $0x28] sm:$0xff]
    %v116 = vld [vmem:[#allocation2 + $0x30] sm:$0xff]
    %v117 = vld [vmem:[#allocation2 + $0x38] sm:$0xff]
    %v118 = vld [vmem:[%s2] sm:$0x3]
    %v120 = vlaneseq
    %v121 = vshrl.u32 %v120, 7
    %v122 = vsub.s32 0, %v121
    %v123 = vrot.slane %v118, %v122
    %v124 = vlaneseq
    %v125 = vshrl.u32 %v124, 7
    %v126 = vsub.s32 1, %v125
    %v127 = vrot.slane %v118, %v126
    %v138 = vunpack.c.l.b16 %v110
    %v139 = vunpack.c.h.b16 %v110
    %v140 = vunpack.c.l.b16 %v111
    %v141 = vunpack.c.h.b16 %v111
    %v142 = vunpack.c.l.b16 %v112
    %v143 = vunpack.c.h.b16 %v112
    %v144 = vunpack.c.l.b16 %v113
    %v145 = vunpack.c.h.b16 %v113
    %v146 = vunpack.c.l.b16 %v114
    %v147 = vunpack.c.h.b16 %v114
    %v148 = vunpack.c.l.b16 %v115
    %v149 = vunpack.c.h.b16 %v115
    %v150 = vunpack.c.l.b16 %v116
    %v151 = vunpack.c.h.b16 %v116
    %v152 = vunpack.c.l.b16 %v117
    %v153 = vunpack.c.h.b16 %v117
    %v154 = vpack.c.b16 %v140, %v138
    %v155 = vpack.c.b16 %v141, %v139
    %v156 = vpack.c.b16 %v144, %v142
    %v157 = vpack.c.b16 %v145, %v143
    %v158 = vpack.c.b16 %v148, %v146
    %v159 = vpack.c.b16 %v149, %v147
    %v160 = vpack.c.b16 %v152, %v150
    %v161 = vpack.c.b16 %v153, %v151
    %vm170 = vcmask 523264
    %v172 = vsel %vm170, %v109, 0
    %174 = vmatprep.subr.bf16.mxu0 0
    %175 = vmatpush1.bf16.msra.mxu0 0
    %176 = vmatprep.subr.bf16.mxu0 0
    %177 = vmatpush1.bf16.msra.mxu0 0
    %178 = vmatprep.subr.bf16.mxu0 0
    %179 = vmatpush1.bf16.msra.mxu0 0
    %180 = vmatprep.subr.bf16.mxu0 0
    %181 = vmatpush1.bf16.msra.mxu0 0
    %182 = vmatprep.subr.bf16.mxu0 %v161
    %183 = vmatpush1.bf16.msra.mxu0 %v160
    %184 = vmatprep.subr.bf16.mxu0 %v159
    %185 = vmatpush1.bf16.msra.mxu0 %v158
    %186 = vmatprep.subr.bf16.mxu0 %v157
    %187 = vmatpush1.bf16.msra.mxu0 %v156
    %188 = vmatprep.subr.bf16.mxu0 %v155
    %189 = vmatpush1.bf16.msra.mxu0 %v154
    %190 = vmatprep.subr.bf16.mxu0 0
    %191 = vmatpush2.bf16.msra.mxu0 0
    %192 = vmatprep.subr.bf16.mxu0 0
    %193 = vmatpush2.bf16.msra.mxu0 0
    %194 = vmatprep.subr.bf16.mxu0 0
    %195 = vmatpush2.bf16.msra.mxu0 0
    %196 = vmatprep.subr.bf16.mxu0 0
    %197 = vmatpush2.bf16.msra.mxu0 0
    %198 = vmatprep.subr.bf16.mxu0 0
    %199 = vmatpush2.bf16.msra.mxu0 0
    %200 = vmatprep.subr.bf16.mxu0 0
    %201 = vmatpush2.bf16.msra.mxu0 0
    %202 = vmatprep.subr.bf16.mxu0 0
    %203 = vmatpush2.bf16.msra.mxu0 0
    %204 = vmatprep.subr.bf16.mxu0 0
    %205 = vmatpush2.bf16.msra.mxu0 0
    %206 = vmatprep.mubr.bf16.mxu0 0
    %207 = vmatmul.mubr.bf16.gmra.mxu0 %v172
    %v208 = vpop.f32.mrf.mxu0
    %v209 = vadd.f32 %v123, %v208
    %v210 = vpop.f32.mrf.mxu0
    %v211 = vadd.f32 %v127, %v210
    %v212 = vpop.f32.mrf.mxu0
    %v213 = vpop.f32.mrf.mxu0
    %214 = vdwg.mxu0
    %v215 = vmax.f32 %v209, 0.0
    %v216 = vmax.f32 %v211, 0.0
    %v217 = vpack.c.bf16 %v215, %v215
    %v218 = vpack.c.bf16 %v216, %v216
    %v219 = vld [vmem:[#allocation5] sm:$0xff]
    %v220 = vld [vmem:[#allocation5 + $0x8] sm:$0xff]
    %v221 = vld [vmem:[#allocation5 + $0x10] sm:$0xff]
    %v222 = vld [vmem:[#allocation5 + $0x18] sm:$0xff]
    %v223 = vld [vmem:[#allocation5 + $0x20] sm:$0xff]
    %v224 = vld [vmem:[#allocation5 + $0x28] sm:$0xff]
    %v225 = vld [vmem:[#allocation5 + $0x30] sm:$0xff]
    %v226 = vld [vmem:[#allocation5 + $0x38] sm:$0xff]
    %v227 = vld [vmem:[#allocation5 + $0x40] sm:$0xff]
    %v228 = vld [vmem:[#allocation5 + $0x48] sm:$0xff]
    %v229 = vld [vmem:[#allocation5 + $0x50] sm:$0xff]
    %v230 = vld [vmem:[#allocation5 + $0x58] sm:$0xff]
    %v231 = vld [vmem:[#allocation5 + $0x60] sm:$0xff]
    %v232 = vld [vmem:[#allocation5 + $0x68] sm:$0xff]
    %v233 = vld [vmem:[#allocation5 + $0x70] sm:$0xff]
    %v234 = vld [vmem:[#allocation5 + $0x78] sm:$0xff]
    %v235 = vld [vmem:[#allocation5 + $0x80] sm:$0xff]
    %v236 = vld [vmem:[#allocation5 + $0x88] sm:$0xff]
    %v237 = vld [vmem:[#allocation5 + $0x90] sm:$0xff]
    %v238 = vld [vmem:[#allocation5 + $0x98] sm:$0xff]
    %v239 = vld [vmem:[%s4] sm:$0x3]
    %v241 = vlaneseq
    %v242 = vshrl.u32 %v241, 7
    %v243 = vsub.s32 0, %v242
    %v244 = vrot.slane %v239, %v243
    %v245 = vlaneseq
    %v246 = vshrl.u32 %v245, 7
    %v247 = vsub.s32 1, %v246
    %v248 = vrot.slane %v239, %v247
    %v271 = vunpack.c.l.b16 %v219
    %v272 = vunpack.c.h.b16 %v219
    %v273 = vunpack.c.l.b16 %v220
    %v274 = vunpack.c.h.b16 %v220
    %v275 = vunpack.c.l.b16 %v221
    %v276 = vunpack.c.h.b16 %v221
    %v277 = vunpack.c.l.b16 %v222
    %v278 = vunpack.c.h.b16 %v222
    %v279 = vunpack.c.l.b16 %v223
    %v280 = vunpack.c.h.b16 %v223
    %v281 = vunpack.c.l.b16 %v224
    %v282 = vunpack.c.h.b16 %v224
    %v283 = vunpack.c.l.b16 %v225
    %v284 = vunpack.c.h.b16 %v225
    %v285 = vunpack.c.l.b16 %v226
    %v286 = vunpack.c.h.b16 %v226
    %v287 = vunpack.c.l.b16 %v227
    %v288 = vunpack.c.h.b16 %v227
    %v289 = vunpack.c.l.b16 %v228
    %v290 = vunpack.c.h.b16 %v228
    %v291 = vunpack.c.l.b16 %v229
    %v292 = vunpack.c.h.b16 %v229
    %v293 = vunpack.c.l.b16 %v230
    %v294 = vunpack.c.h.b16 %v230
    %v295 = vunpack.c.l.b16 %v231
    %v296 = vunpack.c.h.b16 %v231
    %v297 = vunpack.c.l.b16 %v232
    %v298 = vunpack.c.h.b16 %v232
    %v299 = vunpack.c.l.b16 %v233
    %v300 = vunpack.c.h.b16 %v233
    %v301 = vunpack.c.l.b16 %v234
    %v302 = vunpack.c.h.b16 %v234
    %v303 = vunpack.c.l.b16 %v235
    %v304 = vunpack.c.h.b16 %v235
    %v305 = vunpack.c.l.b16 %v236
    %v306 = vunpack.c.h.b16 %v236
    %v307 = vunpack.c.l.b16 %v237
    %v308 = vunpack.c.h.b16 %v237
    %v309 = vunpack.c.l.b16 %v238
    %v310 = vunpack.c.h.b16 %v238
    %v311 = vpack.c.b16 %v273, %v271
    %v312 = vpack.c.b16 %v274, %v272
    %v313 = vpack.c.b16 %v277, %v275
    %v314 = vpack.c.b16 %v278, %v276
    %v315 = vpack.c.b16 %v281, %v279
    %v316 = vpack.c.b16 %v282, %v280
    %v317 = vpack.c.b16 %v285, %v283
    %v318 = vpack.c.b16 %v286, %v284
    %v319 = vpack.c.b16 %v289, %v287
    %v320 = vpack.c.b16 %v290, %v288
    %v321 = vpack.c.b16 %v293, %v291
    %v322 = vpack.c.b16 %v294, %v292
    %v323 = vpack.c.b16 %v297, %v295
    %v324 = vpack.c.b16 %v298, %v296
    %v325 = vpack.c.b16 %v301, %v299
    %v326 = vpack.c.b16 %v302, %v300
    %v327 = vpack.c.b16 %v305, %v303
    %v328 = vpack.c.b16 %v306, %v304
    %v329 = vpack.c.b16 %v309, %v307
    %v330 = vpack.c.b16 %v310, %v308
    %vm351 = vcmask 261120
    %v353 = vsel %vm351, %v218, 0
    %355 = vmatprep.subr.bf16.mxu0 %v326
    %356 = vmatpush1.bf16.msra.mxu0 %v325
    %357 = vmatprep.subr.bf16.mxu0 %v324
    %358 = vmatpush1.bf16.msra.mxu0 %v323
    %359 = vmatprep.subr.bf16.mxu0 %v322
    %360 = vmatpush1.bf16.msra.mxu0 %v321
    %361 = vmatprep.subr.bf16.mxu0 %v320
    %362 = vmatpush1.bf16.msra.mxu0 %v319
    %363 = vmatprep.subr.bf16.mxu0 %v318
    %364 = vmatpush1.bf16.msra.mxu0 %v317
    %365 = vmatprep.subr.bf16.mxu0 %v316
    %366 = vmatpush1.bf16.msra.mxu0 %v315
    %367 = vmatprep.subr.bf16.mxu0 %v314
    %368 = vmatpush1.bf16.msra.mxu0 %v313
    %369 = vmatprep.subr.bf16.mxu0 %v312
    %370 = vmatpush1.bf16.msra.mxu0 %v311
    %371 = vmatprep.subr.bf16.mxu0 0
    %372 = vmatpush2.bf16.msra.mxu0 0
    %373 = vmatprep.subr.bf16.mxu0 0
    %374 = vmatpush2.bf16.msra.mxu0 0
    %375 = vmatprep.subr.bf16.mxu0 0
    %376 = vmatpush2.bf16.msra.mxu0 0
    %377 = vmatprep.subr.bf16.mxu0 0
    %378 = vmatpush2.bf16.msra.mxu0 0
    %379 = vmatprep.subr.bf16.mxu0 0
    %380 = vmatpush2.bf16.msra.mxu0 0
    %381 = vmatprep.subr.bf16.mxu0 0
    %382 = vmatpush2.bf16.msra.mxu0 0
    %383 = vmatprep.subr.bf16.mxu0 %v330
    %384 = vmatpush2.bf16.msra.mxu0 %v329
    %385 = vmatprep.subr.bf16.mxu0 %v328
    %386 = vmatpush2.bf16.msra.mxu0 %v327
    %387 = vmatprep.mubr.bf16.mxu0 %v353
    %388 = vmatmul.mubr.bf16.gmra.mxu0 %v217
    %v389 = vpop.f32.mrf.mxu0
    %v390 = vadd.f32 %v244, %v389
    %v391 = vpop.f32.mrf.mxu0
    %v392 = vadd.f32 %v248, %v391
    %v393 = vpop.f32.mrf.mxu0
    %v394 = vpop.f32.mrf.mxu0
    %395 = vdwg.mxu0
    %v396 = vmax.f32 %v390, 0.0
    %v397 = vmax.f32 %v392, 0.0
    %v398 = vpack.c.bf16 %v396, %v396
    %v399 = vpack.c.bf16 %v397, %v397
    %v400 = vld [vmem:[#allocation7] sm:$0xff]
    %v401 = vld [vmem:[#allocation7 + $0x8] sm:$0xff]
    %v402 = vld [vmem:[#allocation7 + $0x10] sm:$0xff]
    %v403 = vld [vmem:[#allocation7 + $0x18] sm:$0xff]
    %v404 = vld [vmem:[#allocation7 + $0x20] sm:$0xff]
    %v405 = vld [vmem:[#allocation7 + $0x28] sm:$0xff]
    %v406 = vld [vmem:[#allocation7 + $0x30] sm:$0xff]
    %v407 = vld [vmem:[#allocation7 + $0x38] sm:$0xff]
    %v408 = vld [vmem:[#allocation7 + $0x40] sm:$0xff]
    %v409 = vld [vmem:[#allocation7 + $0x48] sm:$0xff]
    %v410 = vld [vmem:[#allocation7 + $0x50] sm:$0xff]
    %v411 = vld [vmem:[#allocation7 + $0x58] sm:$0xff]
    %v412 = vld [vmem:[#allocation7 + $0x60] sm:$0xff]
    %v413 = vld [vmem:[#allocation7 + $0x68] sm:$0xff]
    %v414 = vld [vmem:[#allocation7 + $0x70] sm:$0xff]
    %v415 = vld [vmem:[#allocation7 + $0x78] sm:$0xff]
    %v416 = vld [vmem:[#allocation7 + $0x80] sm:$0xff]
    %v417 = vld [vmem:[#allocation7 + $0x88] sm:$0xff]
    %v418 = vld [vmem:[#allocation7 + $0x90] sm:$0xff]
    %v419 = vld [vmem:[#allocation7 + $0x98] sm:$0xff]
    %v420 = vld [vmem:[%s6] sm:$0x3]
    %v422 = vlaneseq
    %v423 = vshrl.u32 %v422, 7
    %v424 = vsub.s32 0, %v423
    %v425 = vrot.slane %v420, %v424
    %v426 = vlaneseq
    %v427 = vshrl.u32 %v426, 7
    %v428 = vsub.s32 1, %v427
    %v429 = vrot.slane %v420, %v428
    %v452 = vunpack.c.l.b16 %v400
    %v453 = vunpack.c.h.b16 %v400
    %v454 = vunpack.c.l.b16 %v401
    %v455 = vunpack.c.h.b16 %v401
    %v456 = vunpack.c.l.b16 %v402
    %v457 = vunpack.c.h.b16 %v402
    %v458 = vunpack.c.l.b16 %v403
    %v459 = vunpack.c.h.b16 %v403
    %v460 = vunpack.c.l.b16 %v404
    %v461 = vunpack.c.h.b16 %v404
    %v462 = vunpack.c.l.b16 %v405
    %v463 = vunpack.c.h.b16 %v405
    %v464 = vunpack.c.l.b16 %v406
    %v465 = vunpack.c.h.b16 %v406
    %v466 = vunpack.c.l.b16 %v407
    %v467 = vunpack.c.h.b16 %v407
    %v468 = vunpack.c.l.b16 %v408
    %v469 = vunpack.c.h.b16 %v408
    %v470 = vunpack.c.l.b16 %v409
    %v471 = vunpack.c.h.b16 %v409
    %v472 = vunpack.c.l.b16 %v410
    %v473 = vunpack.c.h.b16 %v410
    %v474 = vunpack.c.l.b16 %v411
    %v475 = vunpack.c.h.b16 %v411
    %v476 = vunpack.c.l.b16 %v412
    %v477 = vunpack.c.h.b16 %v412
    %v478 = vunpack.c.l.b16 %v413
    %v479 = vunpack.c.h.b16 %v413
    %v480 = vunpack.c.l.b16 %v414
    %v481 = vunpack.c.h.b16 %v414
    %v482 = vunpack.c.l.b16 %v415
    %v483 = vunpack.c.h.b16 %v415
    %v484 = vunpack.c.l.b16 %v416
    %v485 = vunpack.c.h.b16 %v416
    %v486 = vunpack.c.l.b16 %v417
    %v487 = vunpack.c.h.b16 %v417
    %v488 = vunpack.c.l.b16 %v418
    %v489 = vunpack.c.h.b16 %v418
    %v490 = vunpack.c.l.b16 %v419
    %v491 = vunpack.c.h.b16 %v419
    %v492 = vpack.c.b16 %v454, %v452
    %v493 = vpack.c.b16 %v455, %v453
    %v494 = vpack.c.b16 %v458, %v456
    %v495 = vpack.c.b16 %v459, %v457
    %v496 = vpack.c.b16 %v462, %v460
    %v497 = vpack.c.b16 %v463, %v461
    %v498 = vpack.c.b16 %v466, %v464
    %v499 = vpack.c.b16 %v467, %v465
    %v500 = vpack.c.b16 %v470, %v468
    %v501 = vpack.c.b16 %v471, %v469
    %v502 = vpack.c.b16 %v474, %v472
    %v503 = vpack.c.b16 %v475, %v473
    %v504 = vpack.c.b16 %v478, %v476
    %v505 = vpack.c.b16 %v479, %v477
    %v506 = vpack.c.b16 %v482, %v480
    %v507 = vpack.c.b16 %v483, %v481
    %v508 = vpack.c.b16 %v486, %v484
    %v509 = vpack.c.b16 %v487, %v485
    %v510 = vpack.c.b16 %v490, %v488
    %v511 = vpack.c.b16 %v491, %v489
    %v533 = vsel %vm351, %v399, 0
    %535 = vmatprep.subr.bf16.mxu0 %v507
    %536 = vmatpush1.bf16.msra.mxu0 %v506
    %537 = vmatprep.subr.bf16.mxu0 %v505
    %538 = vmatpush1.bf16.msra.mxu0 %v504
    %539 = vmatprep.subr.bf16.mxu0 %v503
    %540 = vmatpush1.bf16.msra.mxu0 %v502
    %541 = vmatprep.subr.bf16.mxu0 %v501
    %542 = vmatpush1.bf16.msra.mxu0 %v500
    %543 = vmatprep.subr.bf16.mxu0 %v499
    %544 = vmatpush1.bf16.msra.mxu0 %v498
    %545 = vmatprep.subr.bf16.mxu0 %v497
    %546 = vmatpush1.bf16.msra.mxu0 %v496
    %547 = vmatprep.subr.bf16.mxu0 %v495
    %548 = vmatpush1.bf16.msra.mxu0 %v494
    %549 = vmatprep.subr.bf16.mxu0 %v493
    %550 = vmatpush1.bf16.msra.mxu0 %v492
    %551 = vmatprep.subr.bf16.mxu0 0
    %552 = vmatpush2.bf16.msra.mxu0 0
    %553 = vmatprep.subr.bf16.mxu0 0
    %554 = vmatpush2.bf16.msra.mxu0 0
    %555 = vmatprep.subr.bf16.mxu0 0
    %556 = vmatpush2.bf16.msra.mxu0 0
    %557 = vmatprep.subr.bf16.mxu0 0
    %558 = vmatpush2.bf16.msra.mxu0 0
    %559 = vmatprep.subr.bf16.mxu0 0
    %560 = vmatpush2.bf16.msra.mxu0 0
    %561 = vmatprep.subr.bf16.mxu0 0
    %562 = vmatpush2.bf16.msra.mxu0 0
    %563 = vmatprep.subr.bf16.mxu0 %v511
    %564 = vmatpush2.bf16.msra.mxu0 %v510
    %565 = vmatprep.subr.bf16.mxu0 %v509
    %566 = vmatpush2.bf16.msra.mxu0 %v508
    %567 = vmatprep.mubr.bf16.mxu0 %v533
    %568 = vmatmul.mubr.bf16.gmra.mxu0 %v398
    %v569 = vpop.f32.mrf.mxu0
    %v570 = vadd.f32 %v425, %v569
    %v571 = vpop.f32.mrf.mxu0
    %v572 = vadd.f32 %v429, %v571
    %v573 = vpop.f32.mrf.mxu0
    %v574 = vpop.f32.mrf.mxu0
    %575 = vdwg.mxu0
    %v576 = vmax.f32 %v570, 0.0
    %v577 = vmax.f32 %v572, 0.0
    %v578 = vpack.c.bf16 %v576, %v576
    %v579 = vpack.c.bf16 %v577, %v577
    %v580 = vld [vmem:[#allocation8] sm:$0xff]
    %v581 = vld [vmem:[#allocation8 + $0x8] sm:$0xff]
    %v582 = vld [vmem:[#allocation8 + $0x10] sm:$0xff]
    %v583 = vld [vmem:[#allocation8 + $0x18] sm:$0xff]
    %v584 = vld [vmem:[#allocation8 + $0x20] sm:$0xff]
    %v585 = vld [vmem:[#allocation8 + $0x28] sm:$0xff]
    %v586 = vld [vmem:[#allocation8 + $0x30] sm:$0xff]
    %v587 = vld [vmem:[#allocation8 + $0x38] sm:$0xff]
    %v588 = vld [vmem:[#allocation8 + $0x40] sm:$0xff]
    %v589 = vld [vmem:[#allocation8 + $0x48] sm:$0xff]
    %v590 = vld [vmem:[#allocation8 + $0x50] sm:$0xff]
    %v591 = vld [vmem:[#allocation8 + $0x58] sm:$0xff]
    %v592 = vld [vmem:[#allocation8 + $0x60] sm:$0xff]
    %v593 = vld [vmem:[#allocation8 + $0x68] sm:$0xff]
    %v594 = vld [vmem:[#allocation8 + $0x70] sm:$0xff]
    %v595 = vld [vmem:[#allocation8 + $0x78] sm:$0xff]
    %v596 = vld [vmem:[#allocation8 + $0x80] sm:$0xff]
    %v597 = vld [vmem:[#allocation8 + $0x88] sm:$0xff]
    %v598 = vld [vmem:[#allocation8 + $0x90] sm:$0xff]
    %v599 = vld [vmem:[#allocation8 + $0x98] sm:$0xff]
    %v600 = vld [vmem:[%s8] sm:$0x3]
    %v602 = vlaneseq
    %v603 = vshrl.u32 %v602, 7
    %v604 = vsub.s32 0, %v603
    %v605 = vrot.slane %v600, %v604
    %v606 = vlaneseq
    %v607 = vshrl.u32 %v606, 7
    %v608 = vsub.s32 1, %v607
    %v609 = vrot.slane %v600, %v608
    %v632 = vunpack.c.l.b16 %v580
    %v633 = vunpack.c.h.b16 %v580
    %v634 = vunpack.c.l.b16 %v581
    %v635 = vunpack.c.h.b16 %v581
    %v636 = vunpack.c.l.b16 %v582
    %v637 = vunpack.c.h.b16 %v582
    %v638 = vunpack.c.l.b16 %v583
    %v639 = vunpack.c.h.b16 %v583
    %v640 = vunpack.c.l.b16 %v584
    %v641 = vunpack.c.h.b16 %v584
    %v642 = vunpack.c.l.b16 %v585
    %v643 = vunpack.c.h.b16 %v585
    %v644 = vunpack.c.l.b16 %v586
    %v645 = vunpack.c.h.b16 %v586
    %v646 = vunpack.c.l.b16 %v587
    %v647 = vunpack.c.h.b16 %v587
    %v648 = vunpack.c.l.b16 %v588
    %v649 = vunpack.c.h.b16 %v588
    %v650 = vunpack.c.l.b16 %v589
    %v651 = vunpack.c.h.b16 %v589
    %v652 = vunpack.c.l.b16 %v590
    %v653 = vunpack.c.h.b16 %v590
    %v654 = vunpack.c.l.b16 %v591
    %v655 = vunpack.c.h.b16 %v591
    %v656 = vunpack.c.l.b16 %v592
    %v657 = vunpack.c.h.b16 %v592
    %v658 = vunpack.c.l.b16 %v593
    %v659 = vunpack.c.h.b16 %v593
    %v660 = vunpack.c.l.b16 %v594
    %v661 = vunpack.c.h.b16 %v594
    %v662 = vunpack.c.l.b16 %v595
    %v663 = vunpack.c.h.b16 %v595
    %v664 = vunpack.c.l.b16 %v596
    %v665 = vunpack.c.h.b16 %v596
    %v666 = vunpack.c.l.b16 %v597
    %v667 = vunpack.c.h.b16 %v597
    %v668 = vunpack.c.l.b16 %v598
    %v669 = vunpack.c.h.b16 %v598
    %v670 = vunpack.c.l.b16 %v599
    %v671 = vunpack.c.h.b16 %v599
    %v672 = vpack.c.b16 %v634, %v632
    %v673 = vpack.c.b16 %v635, %v633
    %v674 = vpack.c.b16 %v638, %v636
    %v675 = vpack.c.b16 %v639, %v637
    %v676 = vpack.c.b16 %v642, %v640
    %v677 = vpack.c.b16 %v643, %v641
    %v678 = vpack.c.b16 %v646, %v644
    %v679 = vpack.c.b16 %v647, %v645
    %v680 = vpack.c.b16 %v650, %v648
    %v681 = vpack.c.b16 %v651, %v649
    %v682 = vpack.c.b16 %v654, %v652
    %v683 = vpack.c.b16 %v655, %v653
    %v684 = vpack.c.b16 %v658, %v656
    %v685 = vpack.c.b16 %v659, %v657
    %v686 = vpack.c.b16 %v662, %v660
    %v687 = vpack.c.b16 %v663, %v661
    %v688 = vpack.c.b16 %v666, %v664
    %v689 = vpack.c.b16 %v667, %v665
    %v690 = vpack.c.b16 %v670, %v668
    %v691 = vpack.c.b16 %v671, %v669
    %v713 = vsel %vm351, %v579, 0
    %715 = vmatprep.subr.bf16.mxu0 %v687
    %716 = vmatpush1.bf16.msra.mxu0 %v686
    %717 = vmatprep.subr.bf16.mxu0 %v685
    %718 = vmatpush1.bf16.msra.mxu0 %v684
    %719 = vmatprep.subr.bf16.mxu0 %v683
    %720 = vmatpush1.bf16.msra.mxu0 %v682
    %721 = vmatprep.subr.bf16.mxu0 %v681
    %722 = vmatpush1.bf16.msra.mxu0 %v680
    %723 = vmatprep.subr.bf16.mxu0 %v679
    %724 = vmatpush1.bf16.msra.mxu0 %v678
    %725 = vmatprep.subr.bf16.mxu0 %v677
    %726 = vmatpush1.bf16.msra.mxu0 %v676
    %727 = vmatprep.subr.bf16.mxu0 %v675
    %728 = vmatpush1.bf16.msra.mxu0 %v674
    %729 = vmatprep.subr.bf16.mxu0 %v673
    %730 = vmatpush1.bf16.msra.mxu0 %v672
    %731 = vmatprep.subr.bf16.mxu0 0
    %732 = vmatpush2.bf16.msra.mxu0 0
    %733 = vmatprep.subr.bf16.mxu0 0
    %734 = vmatpush2.bf16.msra.mxu0 0
    %735 = vmatprep.subr.bf16.mxu0 0
    %736 = vmatpush2.bf16.msra.mxu0 0
    %737 = vmatprep.subr.bf16.mxu0 0
    %738 = vmatpush2.bf16.msra.mxu0 0
    %739 = vmatprep.subr.bf16.mxu0 0
    %740 = vmatpush2.bf16.msra.mxu0 0
    %741 = vmatprep.subr.bf16.mxu0 0
    %742 = vmatpush2.bf16.msra.mxu0 0
    %743 = vmatprep.subr.bf16.mxu0 %v691
    %744 = vmatpush2.bf16.msra.mxu0 %v690
    %745 = vmatprep.subr.bf16.mxu0 %v689
    %746 = vmatpush2.bf16.msra.mxu0 %v688
    %747 = vmatprep.mubr.bf16.mxu0 %v713
    %748 = vmatmul.mubr.bf16.gmra.mxu0 %v578
    %v749 = vpop.f32.mrf.mxu0
    %v750 = vadd.f32 %v605, %v749
    %v751 = vpop.f32.mrf.mxu0
    %v752 = vadd.f32 %v609, %v751
    %v753 = vpop.f32.mrf.mxu0
    %v754 = vpop.f32.mrf.mxu0
    %755 = vdwg.mxu0
    %v756 = vmax.f32 %v750, 0.0
    %v757 = vmax.f32 %v752, 0.0
    %v758 = vpack.c.bf16 %v756, %v756
    %v759 = vpack.c.bf16 %v757, %v757
    %v760 = vld [vmem:[#allocation10] sm:$0xf]
    %v761 = vld [vmem:[#allocation10 + $0x4] sm:$0xf]
    %v762 = vld [vmem:[#allocation10 + $0x8] sm:$0xf]
    %v763 = vld [vmem:[#allocation10 + $0xc] sm:$0xf]
    %v764 = vld [vmem:[#allocation10 + $0x10] sm:$0xf]
    %v765 = vld [vmem:[#allocation10 + $0x14] sm:$0xf]
    %v766 = vld [vmem:[#allocation10 + $0x18] sm:$0xf]
    %v767 = vld [vmem:[#allocation10 + $0x1c] sm:$0xf]
    %v768 = vld [vmem:[#allocation10 + $0x20] sm:$0xf]
    %v769 = vld [vmem:[#allocation10 + $0x24] sm:$0xf]
    %v770 = vld [vmem:[#allocation10 + $0x28] sm:$0xf]
    %v771 = vld [vmem:[#allocation10 + $0x2c] sm:$0xf]
    %v772 = vld [vmem:[#allocation10 + $0x30] sm:$0xf]
    %v773 = vld [vmem:[#allocation10 + $0x34] sm:$0xf]
    %v774 = vld [vmem:[#allocation10 + $0x38] sm:$0xf]
    %v775 = vld [vmem:[#allocation10 + $0x3c] sm:$0xf]
    %v776 = vld [vmem:[#allocation10 + $0x40] sm:$0xf]
    %v777 = vld [vmem:[#allocation10 + $0x44] sm:$0xf]
    %v778 = vld [vmem:[#allocation10 + $0x48] sm:$0xf]
    %v779 = vld [vmem:[#allocation10 + $0x4c] sm:$0xf]
    %v780 = vld [vmem:[%s10] sm:$0x1]
    %v782 = vlaneseq
    %v783 = vshrl.u32 %v782, 7
    %v784 = vsub.s32 0, %v783
    %v785 = vrot.slane %v780, %v784
    %v807 = vunpack.c.l.b16 %v760
    %v808 = vunpack.c.l.b16 %v761
    %v809 = vunpack.c.l.b16 %v762
    %v810 = vunpack.c.l.b16 %v763
    %v811 = vunpack.c.l.b16 %v764
    %v812 = vunpack.c.l.b16 %v765
    %v813 = vunpack.c.l.b16 %v766
    %v814 = vunpack.c.l.b16 %v767
    %v815 = vunpack.c.l.b16 %v768
    %v816 = vunpack.c.l.b16 %v769
    %v817 = vunpack.c.l.b16 %v770
    %v818 = vunpack.c.l.b16 %v771
    %v819 = vunpack.c.l.b16 %v772
    %v820 = vunpack.c.l.b16 %v773
    %v821 = vunpack.c.l.b16 %v774
    %v822 = vunpack.c.l.b16 %v775
    %v823 = vunpack.c.l.b16 %v776
    %v824 = vunpack.c.l.b16 %v777
    %v825 = vunpack.c.l.b16 %v778
    %v826 = vunpack.c.l.b16 %v779
    %v827 = vpack.c.b16 %v808, %v807
    %v828 = vpack.c.b16 %v810, %v809
    %v829 = vpack.c.b16 %v812, %v811
    %v830 = vpack.c.b16 %v814, %v813
    %v831 = vpack.c.b16 %v816, %v815
    %v832 = vpack.c.b16 %v818, %v817
    %v833 = vpack.c.b16 %v820, %v819
    %v834 = vpack.c.b16 %v822, %v821
    %v835 = vpack.c.b16 %v824, %v823
    %v836 = vpack.c.b16 %v826, %v825
    %v848 = vsel %vm351, %v759, 0
    %850 = vmatprep.subr.bf16.mxu0 0
    %851 = vmatpush1.bf16.msra.mxu0 %v834
    %852 = vmatprep.subr.bf16.mxu0 0
    %853 = vmatpush1.bf16.msra.mxu0 %v833
    %854 = vmatprep.subr.bf16.mxu0 0
    %855 = vmatpush1.bf16.msra.mxu0 %v832
    %856 = vmatprep.subr.bf16.mxu0 0
    %857 = vmatpush1.bf16.msra.mxu0 %v831
    %858 = vmatprep.subr.bf16.mxu0 0
    %859 = vmatpush1.bf16.msra.mxu0 %v830
    %860 = vmatprep.subr.bf16.mxu0 0
    %861 = vmatpush1.bf16.msra.mxu0 %v829
    %862 = vmatprep.subr.bf16.mxu0 0
    %863 = vmatpush1.bf16.msra.mxu0 %v828
    %864 = vmatprep.subr.bf16.mxu0 0
    %865 = vmatpush1.bf16.msra.mxu0 %v827
    %866 = vmatprep.subr.bf16.mxu0 0
    %867 = vmatpush2.bf16.msra.mxu0 0
    %868 = vmatprep.subr.bf16.mxu0 0
    %869 = vmatpush2.bf16.msra.mxu0 0
    %870 = vmatprep.subr.bf16.mxu0 0
    %871 = vmatpush2.bf16.msra.mxu0 0
    %872 = vmatprep.subr.bf16.mxu0 0
    %873 = vmatpush2.bf16.msra.mxu0 0
    %874 = vmatprep.subr.bf16.mxu0 0
    %875 = vmatpush2.bf16.msra.mxu0 0
    %876 = vmatprep.subr.bf16.mxu0 0
    %877 = vmatpush2.bf16.msra.mxu0 0
    %878 = vmatprep.subr.bf16.mxu0 0
    %879 = vmatpush2.bf16.msra.mxu0 %v836
    %880 = vmatprep.subr.bf16.mxu0 0
    %881 = vmatpush2.bf16.msra.mxu0 %v835
    %882 = vmatprep.mubr.bf16.mxu0 %v848
    %883 = vmatmul.mubr.bf16.gmra.mxu0 %v758
    %v884 = vpop.f32.mrf.mxu0
    %v885 = vadd.f32 %v785, %v884
    %v886 = vpop.f32.mrf.mxu0
    %v887 = vpop.f32.mrf.mxu0
    %v888 = vpop.f32.mrf.mxu0
    %889 = vdwg.mxu0
    %v890 = vxor.u32 %v885, 2147483648
    %v891 = vmul.f32 %v890, 1.442695
    %v892 = vpow.pop %v891
    %v893 = vadd.f32 %v892, 1.0
    %v894 = vrcp.pop %v893
    %v895 = vmul.f32 1.0, %v894
    %896 = vst [vmem:[#allocation11] sm:$0xff] %v895
    // Predicated region
    $region66: #{linear_model_forward.1} parent=1 // pred_check
      _
    $region67: #{linear_model_forward.1} parent=1 // pred_check_branch
      %898 = sbr.rel (0) target = $region69
    $region68: #{linear_model_forward.1} parent=1 // pred_region
      %s900 = ssub.s32 128, 128
      %901 = vsyncadd [#allocation4], %s900
      %s903 = sshll.u32 [#allocation11], 4
      %s904 = int_to_ptr.vmem [resolvable:$true] %s903
      %906 = dma.vmem_to_hbm [thread:$0]  %s904, 128, %s11, [#allocation4]
    $region69: #{linear_model_forward.1} parent=1 // pred_fallthru
      _
    // Predicated region
    $region70: #{linear_model_forward.1} parent=1 // pred_check
      _
    $region71: #{linear_model_forward.1} parent=1 // pred_check_branch
      %908 = sbr.rel (0) target = $region73
    $region72: #{linear_model_forward.1} parent=1 // pred_region
      %909 = dma.done [#allocation4], 128
    $region73: #{linear_model_forward.1} parent=1 // pred_fallthru
      _
    %910 = vsyncpa [#allocation3], 1
    %911 = vsyncpa [#allocation6], 1
    %912 = vsyncpa [#allocation9], 1
    %913 = vsyncpa [#allocation4], 1

</llo_original>
